<compile_context>
chip_gen: v5e
topology: v5e:2x2
jax: 0.10.0
libtpu: 0.0.40
codegen_flags: <defaults>
</compile_context>

<pallas_src>
import functools
import math

import jax
import jax.numpy as jnp
from jax import lax
from jax.experimental import pallas as pl
from jax.experimental.pallas import tpu as pltpu


def _msa_kernel(x_ref, wq_ref, wk_ref, wv_ref, bq_ref, bk_ref, bv_ref, o_ref, *,
                matmul_dtype, approx_softmax):
    """One grid step: TB batch elements x H heads, all batched on the MXU.

    x_ref:  (TB, H, S, dh)   head-major input block (matmul_dtype)
    w*_ref: (TB*H, dh, dh)   pre-transposed (in, out) weights, grid-resident
                             (Q weight already carries the 1/sqrt(dh) scale)
    b*_ref: (TB*H, 1, dh)    f32 biases (Q bias already scaled)
    o_ref:  (TB, H, S, dh)   head-major output block (one store)
    """
    TB, H, S, dh = x_ref.shape
    G = TB * H

    # Leading-dim merge (TB, H) -> (TB*H): pure re-indexing of (8,128) tiles.
    x = x_ref[...].reshape(G, S, dh)

    # Projections: contract dh, batch over G; f32 accumulation on the MXU.
    proj = (((2,), (1,)), ((0,), (0,)))
    q = lax.dot_general(x, wq_ref[...], proj,
                        preferred_element_type=jnp.float32) + bq_ref[...]
    k = lax.dot_general(x, wk_ref[...], proj,
                        preferred_element_type=jnp.float32) + bk_ref[...]
    v = lax.dot_general(x, wv_ref[...], proj,
                        preferred_element_type=jnp.float32) + bv_ref[...]

    # scores = q @ k^T (scale already folded into q / bq): (G, S, S) in f32.
    qk = (((2,), (2,)), ((0,), (0,)))
    scores = lax.dot_general(q.astype(matmul_dtype), k.astype(matmul_dtype), qk,
                             preferred_element_type=jnp.float32)

    # Numerically stable softmax, kept entirely in f32 (VPU + EUP).
    m = jnp.max(scores, axis=-1, keepdims=True)
    e = jnp.exp(scores - m)
    denom = jnp.sum(e, axis=-1, keepdims=True)
    if approx_softmax:
        attn = e * pl.reciprocal(denom, approx=True)   # EUP slot, ~free
    else:
        attn = e / denom                               # exact (validation path)

    # out = attn @ v, batched over G, contracting the key axis.
    av = (((2,), (1,)), ((0,), (0,)))
    out = lax.dot_general(attn.astype(matmul_dtype), v.astype(matmul_dtype), av,
                          preferred_element_type=jnp.float32)   # (G, S, dh)

    o_ref[...] = out.reshape(TB, H, S, dh).astype(o_ref.dtype)


def _tile_leading(a, tb):
    """Replicate an (H, ...) array to (tb*H, ...). Tiny; grid-resident, DMA'd once."""
    if tb == 1:
        return a
    return jnp.broadcast_to(a[None], (tb,) + a.shape).reshape(
        (tb * a.shape[0],) + a.shape[1:])


def _pick_batch_tile(B, H, S):
    """Largest divisor of B giving >= ~512 rows/step without blowing up the
    (TB*H, S, S) f32 score block (~24 MiB budget)."""
    best = 1
    for tb in range(1, B + 1):
        if B % tb:
            continue
        if tb * S <= max(512, S) and tb * H * S * S * 4 <= 24 * 1024 * 1024:
            best = tb
    return best


def my_msa_pallas(x, wq, wk, wv, bq, bk, bv, *, n_heads,
                  matmul_dtype=jnp.bfloat16, batch_tile=None,
                  vmem_limit_bytes=64 * 1024 * 1024):
    """x: (B, S, d). w*: (H, d_head, d_head) nn.Linear (out, in). b*: (H, d_head)."""
    B, S, d = x.shape
    assert d % n_heads == 0
    H = n_heads
    dh = d // H
    out_dtype = x.dtype
    scale = 1.0 / math.sqrt(dh)
    # Exact softmax denominator on the f32 validation path; approx EUP otherwise.
    approx_softmax = (matmul_dtype != jnp.float32)

    TB = _pick_batch_tile(B, H, S) if batch_tile is None else batch_tile
    assert B % TB == 0
    G = TB * H

    # Head-major input (one XLA transpose in HBM, outside the grid loop).
    x_h = jnp.swapaxes(x.reshape(B, S, H, dh), 1, 2).astype(matmul_dtype)

    # Pre-transpose nn.Linear (out, in) weights to (in, out); fold the softmax
    # scale into Q; replicate over the batch tile so the kernel runs a single
    # (TB*H)-batched dot_general per matmul.
    wq_t = _tile_leading((jnp.swapaxes(wq, 1, 2) * scale).astype(matmul_dtype), TB)
    wk_t = _tile_leading(jnp.swapaxes(wk, 1, 2).astype(matmul_dtype), TB)
    wv_t = _tile_leading(jnp.swapaxes(wv, 1, 2).astype(matmul_dtype), TB)
    bq_s = _tile_leading((bq * scale).reshape(H, 1, dh).astype(jnp.float32), TB)
    bk_s = _tile_leading(bk.reshape(H, 1, dh).astype(jnp.float32), TB)
    bv_s = _tile_leading(bv.reshape(H, 1, dh).astype(jnp.float32), TB)

    x_spec = pl.BlockSpec((TB, H, S, dh), lambda i: (i, 0, 0, 0))
    w_spec = pl.BlockSpec((G, dh, dh), lambda i: (0, 0, 0))   # grid-resident
    b_spec = pl.BlockSpec((G, 1, dh), lambda i: (0, 0, 0))    # grid-resident
    o_spec = pl.BlockSpec((TB, H, S, dh), lambda i: (i, 0, 0, 0))

    out = pl.pallas_call(
        functools.partial(_msa_kernel, matmul_dtype=matmul_dtype,
                          approx_softmax=approx_softmax),
        out_shape=jax.ShapeDtypeStruct((B, H, S, dh), out_dtype),
        grid_spec=pltpu.PrefetchScalarGridSpec(
            num_scalar_prefetch=0,
            grid=(B // TB,),
            in_specs=[x_spec, w_spec, w_spec, w_spec, b_spec, b_spec, b_spec],
            out_specs=o_spec,
        ),
        compiler_params=pltpu.CompilerParams(
            dimension_semantics=("parallel",),
            vmem_limit_bytes=vmem_limit_bytes),
    )(x_h, wq_t, wk_t, wv_t, bq_s, bk_s, bv_s)

    # (B, H, S, dh) -> (B, S, H*dh) == torch.hstack of the per-head results.
    return jnp.swapaxes(out, 1, 2).reshape(B, S, d)


def my_msa_reference(x, wq, wk, wv, bq, bk, bv, *, n_heads):
    """Pure-JAX reference mirroring the PyTorch loop."""
    B, S, d = x.shape
    dh = d // n_heads
    outs = []
    for b in range(B):
        heads = []
        for h in range(n_heads):
            seq = x[b, :, h * dh:(h + 1) * dh]
            q = seq @ wq[h].T + bq[h]
            k = seq @ wk[h].T + bk[h]
            v = seq @ wv[h].T + bv[h]
            attn = jax.nn.softmax(q @ k.T / math.sqrt(dh), axis=-1)
            heads.append(attn @ v)
        outs.append(jnp.concatenate(heads, axis=-1)[None])
    return jnp.concatenate(outs, axis=0)


if __name__ == "__main__":
    B, S, d, n_heads = 2, 8, 32, 2
    d_head = d // n_heads

    key = jax.random.PRNGKey(0)
    kx, kwq, kwk, kwv, kbq, kbk, kbv = jax.random.split(key, 7)

    x = jax.random.normal(kx, (B, S, d), dtype=jnp.float32)
    lim = 1.0 / math.sqrt(d_head)
    wq = jax.random.uniform(kwq, (n_heads, d_head, d_head), jnp.float32, -lim, lim)
    wk = jax.random.uniform(kwk, (n_heads, d_head, d_head), jnp.float32, -lim, lim)
    wv = jax.random.uniform(kwv, (n_heads, d_head, d_head), jnp.float32, -lim, lim)
    bq = jax.random.uniform(kbq, (n_heads, d_head), jnp.float32, -lim, lim)
    bk = jax.random.uniform(kbk, (n_heads, d_head), jnp.float32, -lim, lim)
    bv = jax.random.uniform(kbv, (n_heads, d_head), jnp.float32, -lim, lim)

    ref = my_msa_reference(x, wq, wk, wv, bq, bk, bv, n_heads=n_heads)

    # f32 validation path (exact softmax divide, f32 MXU operands).
    out_f32 = my_msa_pallas(x, wq, wk, wv, bq, bk, bv, n_heads=n_heads,
                            matmul_dtype=jnp.float32)
    out_f32 = jax.block_until_ready(out_f32)
    assert out_f32.shape == (B, S, d)
    assert jnp.allclose(out_f32, ref, atol=1e-2, rtol=1e-2), "f32 path mismatch"

    # Default bf16-MXU path (v5e/v6e/v7x recommendation); relaxed tolerance.
    out_bf16 = my_msa_pallas(x, wq, wk, wv, bq, bk, bv, n_heads=n_heads)
    out_bf16 = jax.block_until_ready(out_bf16)
    assert out_bf16.shape == (B, S, d)
    assert jnp.allclose(out_bf16, ref, atol=5e-2, rtol=5e-2), "bf16 path mismatch"

    print("KERNEL_OK")
</pallas_src>

<mosaic_0001>
module attributes {stable_mosaic.version = 11 : i64} {
  func.func @_msa_kernel(%arg0: i32, %arg1: memref<2x2x8x16xf32, #tpu.memory_space<vmem>>, %arg2: memref<4x16x16xf32, #tpu.memory_space<vmem>>, %arg3: memref<4x16x16xf32, #tpu.memory_space<vmem>>, %arg4: memref<4x16x16xf32, #tpu.memory_space<vmem>>, %arg5: memref<4x1x16xf32, #tpu.memory_space<vmem>>, %arg6: memref<4x1x16xf32, #tpu.memory_space<vmem>>, %arg7: memref<4x1x16xf32, #tpu.memory_space<vmem>>, %arg8: memref<2x2x8x16xf32, #tpu.memory_space<vmem>>) attributes {dimension_semantics = [#tpu.dimension_semantics<parallel>], iteration_bounds = array<i64: 1>, scalar_prefetch = 0 : i64, scratch_operands = 0 : i64, tpu.core_type = #tpu.core_type<tc>, window_params = [{transform_indices = @transform_0, window_bounds = array<i64: 2, 2, 8, 16>}, {pipeline_mode = #tpu.pipeline_mode<synchronous>, transform_indices = @transform_1, window_bounds = array<i64: 4, 16, 16>}, {pipeline_mode = #tpu.pipeline_mode<synchronous>, transform_indices = @transform_2, window_bounds = array<i64: 4, 16, 16>}, {pipeline_mode = #tpu.pipeline_mode<synchronous>, transform_indices = @transform_3, window_bounds = array<i64: 4, 16, 16>}, {pipeline_mode = #tpu.pipeline_mode<synchronous>, transform_indices = @transform_4, window_bounds = array<i64: 4, 1, 16>}, {pipeline_mode = #tpu.pipeline_mode<synchronous>, transform_indices = @transform_5, window_bounds = array<i64: 4, 1, 16>}, {pipeline_mode = #tpu.pipeline_mode<synchronous>, transform_indices = @transform_6, window_bounds = array<i64: 4, 1, 16>}, {transform_indices = @transform_7, window_bounds = array<i64: 2, 2, 8, 16>}]} {
    %c0 = arith.constant 0 : index
    %c0_0 = arith.constant 0 : index
    %c0_1 = arith.constant 0 : index
    %c0_2 = arith.constant 0 : index
    %0 = vector.load %arg1[%c0, %c0_0, %c0_1, %c0_2] : memref<2x2x8x16xf32, #tpu.memory_space<vmem>>, vector<2x2x8x16xf32>
    %1 = vector.shape_cast %0 : vector<2x2x8x16xf32> to vector<4x8x16xf32>
    %c0_3 = arith.constant 0 : index
    %c0_4 = arith.constant 0 : index
    %c0_5 = arith.constant 0 : index
    %2 = vector.load %arg2[%c0_3, %c0_4, %c0_5] : memref<4x16x16xf32, #tpu.memory_space<vmem>>, vector<4x16x16xf32>
    %cst = arith.constant dense<0.000000e+00> : vector<4x8x16xf32>
    %3 = tpu.matmul %1, %2, %cst {dimension_numbers = #tpu.dot_dimension_numbers<[2], [1], [1], [2], [0, 0, 0, 1, 1, 2], [0], [0]>} : vector<4x8x16xf32>, vector<4x16x16xf32>, vector<4x8x16xf32> -> vector<4x8x16xf32>
    %c0_6 = arith.constant 0 : index
    %c0_7 = arith.constant 0 : index
    %c0_8 = arith.constant 0 : index
    %4 = vector.load %arg5[%c0_6, %c0_7, %c0_8] : memref<4x1x16xf32, #tpu.memory_space<vmem>>, vector<4x1x16xf32>
    %5 = vector.broadcast %4 : vector<4x1x16xf32> to vector<4x8x16xf32>
    %6 = arith.addf %3, %5 : vector<4x8x16xf32>
    %c0_9 = arith.constant 0 : index
    %c0_10 = arith.constant 0 : index
    %c0_11 = arith.constant 0 : index
    %7 = vector.load %arg3[%c0_9, %c0_10, %c0_11] : memref<4x16x16xf32, #tpu.memory_space<vmem>>, vector<4x16x16xf32>
    %cst_12 = arith.constant dense<0.000000e+00> : vector<4x8x16xf32>
    %8 = tpu.matmul %1, %7, %cst_12 {dimension_numbers = #tpu.dot_dimension_numbers<[2], [1], [1], [2], [0, 0, 0, 1, 1, 2], [0], [0]>} : vector<4x8x16xf32>, vector<4x16x16xf32>, vector<4x8x16xf32> -> vector<4x8x16xf32>
    %c0_13 = arith.constant 0 : index
    %c0_14 = arith.constant 0 : index
    %c0_15 = arith.constant 0 : index
    %9 = vector.load %arg6[%c0_13, %c0_14, %c0_15] : memref<4x1x16xf32, #tpu.memory_space<vmem>>, vector<4x1x16xf32>
    %10 = vector.broadcast %9 : vector<4x1x16xf32> to vector<4x8x16xf32>
    %11 = arith.addf %8, %10 : vector<4x8x16xf32>
    %c0_16 = arith.constant 0 : index
    %c0_17 = arith.constant 0 : index
    %c0_18 = arith.constant 0 : index
    %12 = vector.load %arg4[%c0_16, %c0_17, %c0_18] : memref<4x16x16xf32, #tpu.memory_space<vmem>>, vector<4x16x16xf32>
    %cst_19 = arith.constant dense<0.000000e+00> : vector<4x8x16xf32>
    %13 = tpu.matmul %1, %12, %cst_19 {dimension_numbers = #tpu.dot_dimension_numbers<[2], [1], [1], [2], [0, 0, 0, 1, 1, 2], [0], [0]>} : vector<4x8x16xf32>, vector<4x16x16xf32>, vector<4x8x16xf32> -> vector<4x8x16xf32>
    %c0_20 = arith.constant 0 : index
    %c0_21 = arith.constant 0 : index
    %c0_22 = arith.constant 0 : index
    %14 = vector.load %arg7[%c0_20, %c0_21, %c0_22] : memref<4x1x16xf32, #tpu.memory_space<vmem>>, vector<4x1x16xf32>
    %15 = vector.broadcast %14 : vector<4x1x16xf32> to vector<4x8x16xf32>
    %16 = arith.addf %13, %15 : vector<4x8x16xf32>
    %cst_23 = arith.constant dense<0.000000e+00> : vector<4x8x8xf32>
    %17 = tpu.matmul %6, %11, %cst_23 {dimension_numbers = #tpu.dot_dimension_numbers<[2], [2], [1], [1], [0, 0, 0, 1, 1, 1], [0], [0]>} : vector<4x8x16xf32>, vector<4x8x16xf32>, vector<4x8x8xf32> -> vector<4x8x8xf32>
    %cst_24 = arith.constant dense<0xFF800000> : vector<4x8xf32>
    %18 = vector.multi_reduction <maximumf>, %17, %cst_24 [2] : vector<4x8x8xf32> to vector<4x8xf32>
    %19 = vector.shape_cast %18 : vector<4x8xf32> to vector<4x8x1xf32>
    %20 = vector.broadcast %19 : vector<4x8x1xf32> to vector<4x8x8xf32>
    %21 = arith.subf %17, %20 : vector<4x8x8xf32>
    %22 = math.exp %21 : vector<4x8x8xf32>
    %cst_25 = arith.constant dense<0.000000e+00> : vector<4x8xf32>
    %23 = vector.multi_reduction <add>, %22, %cst_25 [2] : vector<4x8x8xf32> to vector<4x8xf32>
    %24 = vector.shape_cast %23 : vector<4x8xf32> to vector<4x8x1xf32>
    %25 = vector.broadcast %24 : vector<4x8x1xf32> to vector<4x8x8xf32>
    %26 = arith.divf %22, %25 : vector<4x8x8xf32>
    %cst_26 = arith.constant dense<0.000000e+00> : vector<4x8x16xf32>
    %27 = tpu.matmul %26, %16, %cst_26 {dimension_numbers = #tpu.dot_dimension_numbers<[2], [1], [1], [2], [0, 0, 0, 1, 1, 2], [0], [0]>} : vector<4x8x8xf32>, vector<4x8x16xf32>, vector<4x8x16xf32> -> vector<4x8x16xf32>
    %28 = vector.shape_cast %27 : vector<4x8x16xf32> to vector<2x2x8x16xf32>
    %c0_27 = arith.constant 0 : index
    %c0_28 = arith.constant 0 : index
    %c0_29 = arith.constant 0 : index
    %c0_30 = arith.constant 0 : index
    %29 = vector.load %arg8[%c0_27, %c0_28, %c0_29, %c0_30] : memref<2x2x8x16xf32, #tpu.memory_space<vmem>>, vector<2x2x8x16xf32>
    tpu.vector_store %arg8[%c0_27, %c0_28, %c0_29, %c0_30], %28 {strides = array<i32>} : memref<2x2x8x16xf32, #tpu.memory_space<vmem>>, vector<2x2x8x16xf32>,
    return
  }
  func.func @transform_0(%arg0: i32) -> (i32, i32, i32, i32) {
    %c0_i32 = arith.constant 0 : i32
    %c0_i32_0 = arith.constant 0 : i32
    %c0_i32_1 = arith.constant 0 : i32
    %c0_i32_2 = arith.constant 0 : i32
    return %arg0, %c0_i32, %c0_i32_0, %c0_i32_1 : i32, i32, i32, i32
  }
  func.func @transform_1(%arg0: i32) -> (i32, i32, i32) {
    %c0_i32 = arith.constant 0 : i32
    %c0_i32_0 = arith.constant 0 : i32
    %c0_i32_1 = arith.constant 0 : i32
    %c0_i32_2 = arith.constant 0 : i32
    return %c0_i32, %c0_i32_0, %c0_i32_1 : i32, i32, i32
  }
  func.func @transform_2(%arg0: i32) -> (i32, i32, i32) {
    %c0_i32 = arith.constant 0 : i32
    %c0_i32_0 = arith.constant 0 : i32
    %c0_i32_1 = arith.constant 0 : i32
    %c0_i32_2 = arith.constant 0 : i32
    return %c0_i32, %c0_i32_0, %c0_i32_1 : i32, i32, i32
  }
  func.func @transform_3(%arg0: i32) -> (i32, i32, i32) {
    %c0_i32 = arith.constant 0 : i32
    %c0_i32_0 = arith.constant 0 : i32
    %c0_i32_1 = arith.constant 0 : i32
    %c0_i32_2 = arith.constant 0 : i32
    return %c0_i32, %c0_i32_0, %c0_i32_1 : i32, i32, i32
  }
  func.func @transform_4(%arg0: i32) -> (i32, i32, i32) {
    %c0_i32 = arith.constant 0 : i32
    %c0_i32_0 = arith.constant 0 : i32
    %c0_i32_1 = arith.constant 0 : i32
    %c0_i32_2 = arith.constant 0 : i32
    return %c0_i32, %c0_i32_0, %c0_i32_1 : i32, i32, i32
  }
  func.func @transform_5(%arg0: i32) -> (i32, i32, i32) {
    %c0_i32 = arith.constant 0 : i32
    %c0_i32_0 = arith.constant 0 : i32
    %c0_i32_1 = arith.constant 0 : i32
    %c0_i32_2 = arith.constant 0 : i32
    return %c0_i32, %c0_i32_0, %c0_i32_1 : i32, i32, i32
  }
  func.func @transform_6(%arg0: i32) -> (i32, i32, i32) {
    %c0_i32 = arith.constant 0 : i32
    %c0_i32_0 = arith.constant 0 : i32
    %c0_i32_1 = arith.constant 0 : i32
    %c0_i32_2 = arith.constant 0 : i32
    return %c0_i32, %c0_i32_0, %c0_i32_1 : i32, i32, i32
  }
  func.func @transform_7(%arg0: i32) -> (i32, i32, i32, i32) {
    %c0_i32 = arith.constant 0 : i32
    %c0_i32_0 = arith.constant 0 : i32
    %c0_i32_1 = arith.constant 0 : i32
    %c0_i32_2 = arith.constant 0 : i32
    return %arg0, %c0_i32, %c0_i32_0, %c0_i32_1 : i32, i32, i32, i32
  }
}

</mosaic_0001>

<llo_original>
// kernel: tpu_custom_call.1
$region0: #{tpu_custom_call.1}
  #allocation0 [shape = 'u32[]', space=smem, size = 0x4, offset = 0x4, fixed_abs, tag = 'smem constant byte address 0x4 - core index']
  #allocation1 [shape = 'u32[72,128]{1,0:T(1,128)}', space=vmem, size = 0x9000, scoped, tag = 'internal scratch']
  %s0 = inlined_call_operand.hbm [shape: f32[2,2,8,16], index: 0, kind: input, shape index: {}]
  %s1 = inlined_call_operand.hbm [shape: f32[4,16,16], index: 1, kind: input, shape index: {}]
  %s2 = inlined_call_operand.hbm [shape: f32[4,16,16], index: 2, kind: input, shape index: {}]
  %s3 = inlined_call_operand.hbm [shape: f32[4,16,16], index: 3, kind: input, shape index: {}]
  %s4 = inlined_call_operand.hbm [shape: f32[4,1,16], index: 4, kind: input, shape index: {}]
  %s5 = inlined_call_operand.vmem [shape: f32[4,1,16], index: 5, kind: input, shape index: {}]
  %s6 = inlined_call_operand.hbm [shape: f32[4,1,16], index: 6, kind: input, shape index: {}]
  %s7 = inlined_call_operand.hbm [shape: f32[2,2,8,16], index: 7, kind: output, shape index: {}]
  %s8 = sld [smem:[#allocation0]]
  $region62: #{tpu_custom_call.1} parent=0
    _
  %s10 = ssub.s32 1, %s8
  %s11 = scalar_select 0, %s10, %s8
  $region1: #{tpu_custom_call.1} parent=0
    #allocation2 [shape = 'u8[16384]{0}', space=vmem, size = 0x4000, scoped, tag = 'input window, operand 0, single buffered']
    #allocation3 [shape = 's32[1]{0}', space=sflag, size = 0x4, scoped, tag = 'scoped memory for tpu_custom_call.1']
    #allocation4 [shape = 's32[1]{0}', space=sflag, size = 0x4, scoped, tag = 'scoped memory for tpu_custom_call.1']
    #allocation5 [shape = 'u8[32768]{0}', space=vmem, size = 0x8000, scoped, tag = 'input window, operand 1, single buffered']
    #allocation6 [shape = 's32[1]{0}', space=sflag, size = 0x4, scoped, tag = 'scoped memory for tpu_custom_call.1']
    #allocation7 [shape = 'u8[32768]{0}', space=vmem, size = 0x8000, scoped, tag = 'input window, operand 2, single buffered']
    #allocation8 [shape = 'u8[32768]{0}', space=vmem, size = 0x8000, scoped, tag = 'input window, operand 3, single buffered']
    #allocation9 [shape = 's32[1]{0}', space=sflag, size = 0x4, scoped, tag = 'scoped memory for tpu_custom_call.1']
    #allocation10 [shape = 'u8[2048]{0}', space=vmem, size = 0x800, scoped, tag = 'input window, operand 4, single buffered']
    #allocation11 [shape = 'u8[2048]{0}', space=vmem, size = 0x800, scoped, tag = 'input window, operand 6, single buffered']
    #allocation12 [shape = 's32[1]{0}', space=sflag, size = 0x4, scoped, tag = 'scoped memory for tpu_custom_call.1']
    #allocation13 [shape = 'u8[16384]{0}', space=vmem, size = 0x4000, scoped, tag = 'output window, operand 0, single buffered']
    %12 = vsyncpa [#allocation3], 0
    %13 = vsyncpa [#allocation6], 0
    %14 = vsyncpa [#allocation9], 0
    %15 = vsyncpa [#allocation12], 0
    %16 = vsyncpa [#allocation4], 0
    // Predicated region
    $region2: #{tpu_custom_call.1} parent=1 // pred_check
      _
    $region3: #{tpu_custom_call.1} parent=1 // pred_check_branch
      %18 = sbr.rel (0) target = $region5
    $region4: #{tpu_custom_call.1} parent=1 // pred_region
      %20 = vsyncadd [#allocation3], 0
      %s21 = sshll.u32 %s0, 4
      %s22 = int_to_ptr.hbm [resolvable:$true] %s21
      %s23 = sshll.u32 [#allocation2], 4
      %s24 = int_to_ptr.vmem [resolvable:$true] %s23
      %29 = dma.hbm_to_vmem [thread:$0]  %s22, 512, %s24, [#allocation3], 128, 128, 8
    $region5: #{tpu_custom_call.1} parent=1 // pred_fallthru
      _
    // Predicated region
    $region6: #{tpu_custom_call.1} parent=1 // pred_check
      _
    $region7: #{tpu_custom_call.1} parent=1 // pred_check_branch
      %31 = sbr.rel (0) target = $region9
    $region8: #{tpu_custom_call.1} parent=1 // pred_region
      %33 = vsyncadd [#allocation6], 0
      %s34 = sshll.u32 %s1, 4
      %s35 = int_to_ptr.hbm [resolvable:$true] %s34
      %s36 = sshll.u32 [#allocation5], 4
      %s37 = int_to_ptr.vmem [resolvable:$true] %s36
      %42 = dma.hbm_to_vmem [thread:$0]  %s35, 1024, %s37, [#allocation6], 128, 128, 8
    $region9: #{tpu_custom_call.1} parent=1 // pred_fallthru
      _
    // Predicated region
    $region10: #{tpu_custom_call.1} parent=1 // pred_check
      _
    $region11: #{tpu_custom_call.1} parent=1 // pred_check_branch
      %44 = sbr.rel (0) target = $region13
    $region12: #{tpu_custom_call.1} parent=1 // pred_region
      %46 = vsyncadd [#allocation6], 0
      %s47 = sshll.u32 %s2, 4
      %s48 = int_to_ptr.hbm [resolvable:$true] %s47
      %s49 = sshll.u32 [#allocation7], 4
      %s50 = int_to_ptr.vmem [resolvable:$true] %s49
      %55 = dma.hbm_to_vmem [thread:$0]  %s48, 1024, %s50, [#allocation6], 128, 128, 8
    $region13: #{tpu_custom_call.1} parent=1 // pred_fallthru
      _
    // Predicated region
    $region14: #{tpu_custom_call.1} parent=1 // pred_check
      _
    $region15: #{tpu_custom_call.1} parent=1 // pred_check_branch
      %57 = sbr.rel (0) target = $region17
    $region16: #{tpu_custom_call.1} parent=1 // pred_region
      %59 = vsyncadd [#allocation9], 0
      %s60 = sshll.u32 %s3, 4
      %s61 = int_to_ptr.hbm [resolvable:$true] %s60
      %s62 = sshll.u32 [#allocation8], 4
      %s63 = int_to_ptr.vmem [resolvable:$true] %s62
      %68 = dma.hbm_to_vmem [thread:$0]  %s61, 1024, %s63, [#allocation9], 128, 128, 8
    $region17: #{tpu_custom_call.1} parent=1 // pred_fallthru
      _
    // Predicated region
    $region18: #{tpu_custom_call.1} parent=1 // pred_check
      _
    $region19: #{tpu_custom_call.1} parent=1 // pred_check_branch
      %70 = sbr.rel (0) target = $region21
    $region20: #{tpu_custom_call.1} parent=1 // pred_region
      %72 = vsyncadd [#allocation9], 0
      %s73 = sshll.u32 %s4, 4
      %s74 = int_to_ptr.hbm [resolvable:$true] %s73
      %s75 = sshll.u32 [#allocation10], 4
      %s76 = int_to_ptr.vmem [resolvable:$true] %s75
      %81 = dma.hbm_to_vmem [thread:$0]  %s74, 64, %s76, [#allocation9], 16, 16, 1
    $region21: #{tpu_custom_call.1} parent=1 // pred_fallthru
      _
    // Predicated region
    $region22: #{tpu_custom_call.1} parent=1 // pred_check
      _
    $region23: #{tpu_custom_call.1} parent=1 // pred_check_branch
      %83 = sbr.rel (0) target = $region25
    $region24: #{tpu_custom_call.1} parent=1 // pred_region
      _
    $region25: #{tpu_custom_call.1} parent=1 // pred_fallthru
      _
    // Predicated region
    $region26: #{tpu_custom_call.1} parent=1 // pred_check
      _
    $region27: #{tpu_custom_call.1} parent=1 // pred_check_branch
      %85 = sbr.rel (0) target = $region29
    $region28: #{tpu_custom_call.1} parent=1 // pred_region
      %87 = vsyncadd [#allocation12], 0
      %s88 = sshll.u32 %s6, 4
      %s89 = int_to_ptr.hbm [resolvable:$true] %s88
      %s90 = sshll.u32 [#allocation11], 4
      %s91 = int_to_ptr.vmem [resolvable:$true] %s90
      %96 = dma.hbm_to_vmem [thread:$0]  %s89, 64, %s91, [#allocation12], 16, 16, 1
    $region29: #{tpu_custom_call.1} parent=1 // pred_fallthru
      _
    // Predicated region
    $region30: #{tpu_custom_call.1} parent=1 // pred_check
      _
    $region31: #{tpu_custom_call.1} parent=1 // pred_check_branch
      %98 = sbr.rel (0) target = $region33
    $region32: #{tpu_custom_call.1} parent=1 // pred_region
      %100 = dma.done [#allocation3], 512
    $region33: #{tpu_custom_call.1} parent=1 // pred_fallthru
      _
    // Predicated region
    $region34: #{tpu_custom_call.1} parent=1 // pred_check
      _
    $region35: #{tpu_custom_call.1} parent=1 // pred_check_branch
      %102 = sbr.rel (0) target = $region37
    $region36: #{tpu_custom_call.1} parent=1 // pred_region
      %104 = dma.done [#allocation6], 1024
    $region37: #{tpu_custom_call.1} parent=1 // pred_fallthru
      _
    // Predicated region
    $region38: #{tpu_custom_call.1} parent=1 // pred_check
      _
    $region39: #{tpu_custom_call.1} parent=1 // pred_check_branch
      %106 = sbr.rel (0) target = $region41
    $region40: #{tpu_custom_call.1} parent=1 // pred_region
      %108 = dma.done [#allocation6], 1024
    $region41: #{tpu_custom_call.1} parent=1 // pred_fallthru
      _
    // Predicated region
    $region42: #{tpu_custom_call.1} parent=1 // pred_check
      _
    $region43: #{tpu_custom_call.1} parent=1 // pred_check_branch
      %110 = sbr.rel (0) target = $region45
    $region44: #{tpu_custom_call.1} parent=1 // pred_region
      %112 = dma.done [#allocation9], 1024
    $region45: #{tpu_custom_call.1} parent=1 // pred_fallthru
      _
    // Predicated region
    $region46: #{tpu_custom_call.1} parent=1 // pred_check
      _
    $region47: #{tpu_custom_call.1} parent=1 // pred_check_branch
      %114 = sbr.rel (0) target = $region49
    $region48: #{tpu_custom_call.1} parent=1 // pred_region
      %116 = dma.done [#allocation9], 64
    $region49: #{tpu_custom_call.1} parent=1 // pred_fallthru
      _
    // Predicated region
    $region50: #{tpu_custom_call.1} parent=1 // pred_check
      _
    $region51: #{tpu_custom_call.1} parent=1 // pred_check_branch
      %118 = sbr.rel (0) target = $region53
    $region52: #{tpu_custom_call.1} parent=1 // pred_region
      %120 = dma.done [#allocation12], 64
    $region53: #{tpu_custom_call.1} parent=1 // pred_fallthru
      _
    %v121 = vld [vmem:[#allocation2] sm:$0xff]
    %v122 = vld [vmem:[#allocation2 + $0x8] sm:$0xff]
    %v123 = vld [vmem:[#allocation2 + $0x10] sm:$0xff]
    %v124 = vld [vmem:[#allocation2 + $0x18] sm:$0xff]
    %v125 = vld [vmem:[#allocation5] sm:$0xff]
    %v126 = vld [vmem:[#allocation5 + $0x8] sm:$0xff]
    %v127 = vld [vmem:[#allocation5 + $0x10] sm:$0xff]
    %v128 = vld [vmem:[#allocation5 + $0x18] sm:$0xff]
    %v129 = vld [vmem:[#allocation5 + $0x20] sm:$0xff]
    %v130 = vld [vmem:[#allocation5 + $0x28] sm:$0xff]
    %v131 = vld [vmem:[#allocation5 + $0x30] sm:$0xff]
    %v132 = vld [vmem:[#allocation5 + $0x38] sm:$0xff]
    %v133 = vld [vmem:[#allocation10] sm:$0x1]
    %v134 = vld [vmem:[#allocation10 + $0x1] sm:$0x1]
    %v135 = vld [vmem:[#allocation10 + $0x2] sm:$0x1]
    %v136 = vld [vmem:[#allocation10 + $0x3] sm:$0x1]
    %v141 = vperm.slane %v133, 0
    %v142 = vperm.slane %v134, 0
    %v143 = vperm.slane %v135, 0
    %v144 = vperm.slane %v136, 0
    %vm149 = vcmask 130048
    %v151 = vsel %vm149, %v121, 0
    %153 = vmatpush.msra.mxu0 0.0
    %154 = vmatpush.msra.mxu0 0.0
    %155 = vmatpush.msra.mxu0 0.0
    %156 = vmatpush.msra.mxu0 0.0
    %157 = vmatpush.msra.mxu0 0.0
    %158 = vmatpush.msra.mxu0 0.0
    %159 = vmatpush.msra.mxu0 0.0
    %160 = vmatpush.msra.mxu0 0.0
    %161 = vmatpush.msra.mxu0 0.0
    %162 = vmatpush.msra.mxu0 0.0
    %163 = vmatpush.msra.mxu0 0.0
    %164 = vmatpush.msra.mxu0 0.0
    %165 = vmatpush.msra.mxu0 0.0
    %166 = vmatpush.msra.mxu0 0.0
    %167 = vmatpush.msra.mxu0 %v126
    %168 = vmatpush.msra.mxu0 %v125
    %169 = vmatmul.f32.gmra.mxu0 %v151
    %v170 = vpop.f32.mrf.mxu0
    %v171 = vadd.f32 %v141, %v170
    %172 = vdwg.mxu0
    %v174 = vsel %vm149, %v122, 0
    %176 = vmatpush.msra.mxu0 0.0
    %177 = vmatpush.msra.mxu0 0.0
    %178 = vmatpush.msra.mxu0 0.0
    %179 = vmatpush.msra.mxu0 0.0
    %180 = vmatpush.msra.mxu0 0.0
    %181 = vmatpush.msra.mxu0 0.0
    %182 = vmatpush.msra.mxu0 0.0
    %183 = vmatpush.msra.mxu0 0.0
    %184 = vmatpush.msra.mxu0 0.0
    %185 = vmatpush.msra.mxu0 0.0
    %186 = vmatpush.msra.mxu0 0.0
    %187 = vmatpush.msra.mxu0 0.0
    %188 = vmatpush.msra.mxu0 0.0
    %189 = vmatpush.msra.mxu0 0.0
    %190 = vmatpush.msra.mxu0 %v128
    %191 = vmatpush.msra.mxu0 %v127
    %192 = vmatmul.f32.gmra.mxu0 %v174
    %v193 = vpop.f32.mrf.mxu0
    %v194 = vadd.f32 %v142, %v193
    %195 = vdwg.mxu0
    %v197 = vsel %vm149, %v123, 0
    %199 = vmatpush.msra.mxu0 0.0
    %200 = vmatpush.msra.mxu0 0.0
    %201 = vmatpush.msra.mxu0 0.0
    %202 = vmatpush.msra.mxu0 0.0
    %203 = vmatpush.msra.mxu0 0.0
    %204 = vmatpush.msra.mxu0 0.0
    %205 = vmatpush.msra.mxu0 0.0
    %206 = vmatpush.msra.mxu0 0.0
    %207 = vmatpush.msra.mxu0 0.0
    %208 = vmatpush.msra.mxu0 0.0
    %209 = vmatpush.msra.mxu0 0.0
    %210 = vmatpush.msra.mxu0 0.0
    %211 = vmatpush.msra.mxu0 0.0
    %212 = vmatpush.msra.mxu0 0.0
    %213 = vmatpush.msra.mxu0 %v130
    %214 = vmatpush.msra.mxu0 %v129
    %215 = vmatmul.f32.gmra.mxu0 %v197
    %v216 = vpop.f32.mrf.mxu0
    %v217 = vadd.f32 %v143, %v216
    %218 = vdwg.mxu0
    %v220 = vsel %vm149, %v124, 0
    %222 = vmatpush.msra.mxu0 0.0
    %223 = vmatpush.msra.mxu0 0.0
    %224 = vmatpush.msra.mxu0 0.0
    %225 = vmatpush.msra.mxu0 0.0
    %226 = vmatpush.msra.mxu0 0.0
    %227 = vmatpush.msra.mxu0 0.0
    %228 = vmatpush.msra.mxu0 0.0
    %229 = vmatpush.msra.mxu0 0.0
    %230 = vmatpush.msra.mxu0 0.0
    %231 = vmatpush.msra.mxu0 0.0
    %232 = vmatpush.msra.mxu0 0.0
    %233 = vmatpush.msra.mxu0 0.0
    %234 = vmatpush.msra.mxu0 0.0
    %235 = vmatpush.msra.mxu0 0.0
    %236 = vmatpush.msra.mxu0 %v132
    %237 = vmatpush.msra.mxu0 %v131
    %238 = vmatmul.f32.gmra.mxu0 %v220
    %v239 = vpop.f32.mrf.mxu0
    %v240 = vadd.f32 %v144, %v239
    %241 = vdwg.mxu0
    %v242 = vld [vmem:[#allocation7] sm:$0xff]
    %v243 = vld [vmem:[#allocation7 + $0x8] sm:$0xff]
    %v244 = vld [vmem:[#allocation7 + $0x10] sm:$0xff]
    %v245 = vld [vmem:[#allocation7 + $0x18] sm:$0xff]
    %v246 = vld [vmem:[#allocation7 + $0x20] sm:$0xff]
    %v247 = vld [vmem:[#allocation7 + $0x28] sm:$0xff]
    %v248 = vld [vmem:[#allocation7 + $0x30] sm:$0xff]
    %v249 = vld [vmem:[#allocation7 + $0x38] sm:$0xff]
    %v250 = vld [vmem:[%s5] sm:$0x1]
    %v251 = vld [vmem:[%s5 + $0x1] sm:$0x1]
    %v252 = vld [vmem:[%s5 + $0x2] sm:$0x1]
    %v253 = vld [vmem:[%s5 + $0x3] sm:$0x1]
    %v258 = vperm.slane %v250, 0
    %v259 = vperm.slane %v251, 0
    %v260 = vperm.slane %v252, 0
    %v261 = vperm.slane %v253, 0
    %266 = vmatpush.msra.mxu0 0.0
    %267 = vmatpush.msra.mxu0 0.0
    %268 = vmatpush.msra.mxu0 0.0
    %269 = vmatpush.msra.mxu0 0.0
    %270 = vmatpush.msra.mxu0 0.0
    %271 = vmatpush.msra.mxu0 0.0
    %272 = vmatpush.msra.mxu0 0.0
    %273 = vmatpush.msra.mxu0 0.0
    %274 = vmatpush.msra.mxu0 0.0
    %275 = vmatpush.msra.mxu0 0.0
    %276 = vmatpush.msra.mxu0 0.0
    %277 = vmatpush.msra.mxu0 0.0
    %278 = vmatpush.msra.mxu0 0.0
    %279 = vmatpush.msra.mxu0 0.0
    %280 = vmatpush.msra.mxu0 %v243
    %281 = vmatpush.msra.mxu0 %v242
    %282 = vmatmul.f32.gmra.mxu0 %v151
    %v283 = vpop.f32.mrf.mxu0
    %v284 = vadd.f32 %v258, %v283
    %285 = vdwg.mxu0
    %286 = vmatpush.msra.mxu0 0.0
    %287 = vmatpush.msra.mxu0 0.0
    %288 = vmatpush.msra.mxu0 0.0
    %289 = vmatpush.msra.mxu0 0.0
    %290 = vmatpush.msra.mxu0 0.0
    %291 = vmatpush.msra.mxu0 0.0
    %292 = vmatpush.msra.mxu0 0.0
    %293 = vmatpush.msra.mxu0 0.0
    %294 = vmatpush.msra.mxu0 0.0
    %295 = vmatpush.msra.mxu0 0.0
    %296 = vmatpush.msra.mxu0 0.0
    %297 = vmatpush.msra.mxu0 0.0
    %298 = vmatpush.msra.mxu0 0.0
    %299 = vmatpush.msra.mxu0 0.0
    %300 = vmatpush.msra.mxu0 %v245
    %301 = vmatpush.msra.mxu0 %v244
    %302 = vmatmul.f32.gmra.mxu0 %v174
    %v303 = vpop.f32.mrf.mxu0
    %v304 = vadd.f32 %v259, %v303
    %305 = vdwg.mxu0
    %306 = vmatpush.msra.mxu0 0.0
    %307 = vmatpush.msra.mxu0 0.0
    %308 = vmatpush.msra.mxu0 0.0
    %309 = vmatpush.msra.mxu0 0.0
    %310 = vmatpush.msra.mxu0 0.0
    %311 = vmatpush.msra.mxu0 0.0
    %312 = vmatpush.msra.mxu0 0.0
    %313 = vmatpush.msra.mxu0 0.0
    %314 = vmatpush.msra.mxu0 0.0
    %315 = vmatpush.msra.mxu0 0.0
    %316 = vmatpush.msra.mxu0 0.0
    %317 = vmatpush.msra.mxu0 0.0
    %318 = vmatpush.msra.mxu0 0.0
    %319 = vmatpush.msra.mxu0 0.0
    %320 = vmatpush.msra.mxu0 %v247
    %321 = vmatpush.msra.mxu0 %v246
    %322 = vmatmul.f32.gmra.mxu0 %v197
    %v323 = vpop.f32.mrf.mxu0
    %v324 = vadd.f32 %v260, %v323
    %325 = vdwg.mxu0
    %326 = vmatpush.msra.mxu0 0.0
    %327 = vmatpush.msra.mxu0 0.0
    %328 = vmatpush.msra.mxu0 0.0
    %329 = vmatpush.msra.mxu0 0.0
    %330 = vmatpush.msra.mxu0 0.0
    %331 = vmatpush.msra.mxu0 0.0
    %332 = vmatpush.msra.mxu0 0.0
    %333 = vmatpush.msra.mxu0 0.0
    %334 = vmatpush.msra.mxu0 0.0
    %335 = vmatpush.msra.mxu0 0.0
    %336 = vmatpush.msra.mxu0 0.0
    %337 = vmatpush.msra.mxu0 0.0
    %338 = vmatpush.msra.mxu0 0.0
    %339 = vmatpush.msra.mxu0 0.0
    %340 = vmatpush.msra.mxu0 %v249
    %341 = vmatpush.msra.mxu0 %v248
    %342 = vmatmul.f32.gmra.mxu0 %v220
    %v343 = vpop.f32.mrf.mxu0
    %v344 = vadd.f32 %v261, %v343
    %345 = vdwg.mxu0
    %v346 = vld [vmem:[#allocation8] sm:$0xff]
    %v347 = vld [vmem:[#allocation8 + $0x8] sm:$0xff]
    %v348 = vld [vmem:[#allocation8 + $0x10] sm:$0xff]
    %v349 = vld [vmem:[#allocation8 + $0x18] sm:$0xff]
    %v350 = vld [vmem:[#allocation8 + $0x20] sm:$0xff]
    %v351 = vld [vmem:[#allocation8 + $0x28] sm:$0xff]
    %v352 = vld [vmem:[#allocation8 + $0x30] sm:$0xff]
    %v353 = vld [vmem:[#allocation8 + $0x38] sm:$0xff]
    %v354 = vld [vmem:[#allocation11] sm:$0x1]
    %v355 = vld [vmem:[#allocation11 + $0x1] sm:$0x1]
    %v356 = vld [vmem:[#allocation11 + $0x2] sm:$0x1]
    %v357 = vld [vmem:[#allocation11 + $0x3] sm:$0x1]
    %v362 = vperm.slane %v354, 0
    %v363 = vperm.slane %v355, 0
    %v364 = vperm.slane %v356, 0
    %v365 = vperm.slane %v357, 0
    %370 = vmatpush.msra.mxu0 0.0
    %371 = vmatpush.msra.mxu0 0.0
    %372 = vmatpush.msra.mxu0 0.0
    %373 = vmatpush.msra.mxu0 0.0
    %374 = vmatpush.msra.mxu0 0.0
    %375 = vmatpush.msra.mxu0 0.0
    %376 = vmatpush.msra.mxu0 0.0
    %377 = vmatpush.msra.mxu0 0.0
    %378 = vmatpush.msra.mxu0 0.0
    %379 = vmatpush.msra.mxu0 0.0
    %380 = vmatpush.msra.mxu0 0.0
    %381 = vmatpush.msra.mxu0 0.0
    %382 = vmatpush.msra.mxu0 0.0
    %383 = vmatpush.msra.mxu0 0.0
    %384 = vmatpush.msra.mxu0 %v347
    %385 = vmatpush.msra.mxu0 %v346
    %386 = vmatmul.f32.gmra.mxu0 %v151
    %v387 = vpop.f32.mrf.mxu0
    %v388 = vadd.f32 %v362, %v387
    %389 = vdwg.mxu0
    %390 = vmatpush.msra.mxu0 0.0
    %391 = vmatpush.msra.mxu0 0.0
    %392 = vmatpush.msra.mxu0 0.0
    %393 = vmatpush.msra.mxu0 0.0
    %394 = vmatpush.msra.mxu0 0.0
    %395 = vmatpush.msra.mxu0 0.0
    %396 = vmatpush.msra.mxu0 0.0
    %397 = vmatpush.msra.mxu0 0.0
    %398 = vmatpush.msra.mxu0 0.0
    %399 = vmatpush.msra.mxu0 0.0
    %400 = vmatpush.msra.mxu0 0.0
    %401 = vmatpush.msra.mxu0 0.0
    %402 = vmatpush.msra.mxu0 0.0
    %403 = vmatpush.msra.mxu0 0.0
    %404 = vmatpush.msra.mxu0 %v349
    %405 = vmatpush.msra.mxu0 %v348
    %406 = vmatmul.f32.gmra.mxu0 %v174
    %v407 = vpop.f32.mrf.mxu0
    %v408 = vadd.f32 %v363, %v407
    %409 = vdwg.mxu0
    %410 = vmatpush.msra.mxu0 0.0
    %411 = vmatpush.msra.mxu0 0.0
    %412 = vmatpush.msra.mxu0 0.0
    %413 = vmatpush.msra.mxu0 0.0
    %414 = vmatpush.msra.mxu0 0.0
    %415 = vmatpush.msra.mxu0 0.0
    %416 = vmatpush.msra.mxu0 0.0
    %417 = vmatpush.msra.mxu0 0.0
    %418 = vmatpush.msra.mxu0 0.0
    %419 = vmatpush.msra.mxu0 0.0
    %420 = vmatpush.msra.mxu0 0.0
    %421 = vmatpush.msra.mxu0 0.0
    %422 = vmatpush.msra.mxu0 0.0
    %423 = vmatpush.msra.mxu0 0.0
    %424 = vmatpush.msra.mxu0 %v351
    %425 = vmatpush.msra.mxu0 %v350
    %426 = vmatmul.f32.gmra.mxu0 %v197
    %v427 = vpop.f32.mrf.mxu0
    %v428 = vadd.f32 %v364, %v427
    %429 = vdwg.mxu0
    %430 = vmatpush.msra.mxu0 0.0
    %431 = vmatpush.msra.mxu0 0.0
    %432 = vmatpush.msra.mxu0 0.0
    %433 = vmatpush.msra.mxu0 0.0
    %434 = vmatpush.msra.mxu0 0.0
    %435 = vmatpush.msra.mxu0 0.0
    %436 = vmatpush.msra.mxu0 0.0
    %437 = vmatpush.msra.mxu0 0.0
    %438 = vmatpush.msra.mxu0 0.0
    %439 = vmatpush.msra.mxu0 0.0
    %440 = vmatpush.msra.mxu0 0.0
    %441 = vmatpush.msra.mxu0 0.0
    %442 = vmatpush.msra.mxu0 0.0
    %443 = vmatpush.msra.mxu0 0.0
    %444 = vmatpush.msra.mxu0 %v353
    %445 = vmatpush.msra.mxu0 %v352
    %446 = vmatmul.f32.gmra.mxu0 %v220
    %v447 = vpop.f32.mrf.mxu0
    %v448 = vadd.f32 %v365, %v447
    %449 = vdwg.mxu0
    %v451 = vsel %vm149, %v171, 0
    %v454 = vsel %vm149, %v284, 0
    %456 = vmatpush.xpose.msra.mxu0 0.0
    %457 = vmatpush.xpose.msra.mxu0 0.0
    %458 = vmatpush.xpose.msra.mxu0 0.0
    %459 = vmatpush.xpose.msra.mxu0 0.0
    %460 = vmatpush.xpose.msra.mxu0 0.0
    %461 = vmatpush.xpose.msra.mxu0 0.0
    %462 = vmatpush.xpose.msra.mxu0 0.0
    %463 = vmatpush.xpose.msra.mxu0 0.0
    %464 = vmatpush.xpose.msra.mxu0 0.0
    %465 = vmatpush.xpose.msra.mxu0 0.0
    %466 = vmatpush.xpose.msra.mxu0 0.0
    %467 = vmatpush.xpose.msra.mxu0 0.0
    %468 = vmatpush.xpose.msra.mxu0 0.0
    %469 = vmatpush.xpose.msra.mxu0 0.0
    %470 = vmatpush.xpose.msra.mxu0 0.0
    %471 = vmatpush.xpose.msra.mxu0 %v454
    %472 = vmatmul.f32.gmra.mxu0 %v451
    %v473 = vpop.f32.mrf.mxu0
    %v474 = vadd.f32 0.0, %v473
    %475 = vdwg.mxu0
    %v477 = vsel %vm149, %v194, 0
    %v480 = vsel %vm149, %v304, 0
    %482 = vmatpush.xpose.msra.mxu0 0.0
    %483 = vmatpush.xpose.msra.mxu0 0.0
    %484 = vmatpush.xpose.msra.mxu0 0.0
    %485 = vmatpush.xpose.msra.mxu0 0.0
    %486 = vmatpush.xpose.msra.mxu0 0.0
    %487 = vmatpush.xpose.msra.mxu0 0.0
    %488 = vmatpush.xpose.msra.mxu0 0.0
    %489 = vmatpush.xpose.msra.mxu0 0.0
    %490 = vmatpush.xpose.msra.mxu0 0.0
    %491 = vmatpush.xpose.msra.mxu0 0.0
    %492 = vmatpush.xpose.msra.mxu0 0.0
    %493 = vmatpush.xpose.msra.mxu0 0.0
    %494 = vmatpush.xpose.msra.mxu0 0.0
    %495 = vmatpush.xpose.msra.mxu0 0.0
    %496 = vmatpush.xpose.msra.mxu0 0.0
    %497 = vmatpush.xpose.msra.mxu0 %v480
    %498 = vmatmul.f32.gmra.mxu0 %v477
    %v499 = vpop.f32.mrf.mxu0
    %v500 = vadd.f32 0.0, %v499
    %501 = vdwg.mxu0
    %v503 = vsel %vm149, %v217, 0
    %v506 = vsel %vm149, %v324, 0
    %508 = vmatpush.xpose.msra.mxu0 0.0
    %509 = vmatpush.xpose.msra.mxu0 0.0
    %510 = vmatpush.xpose.msra.mxu0 0.0
    %511 = vmatpush.xpose.msra.mxu0 0.0
    %512 = vmatpush.xpose.msra.mxu0 0.0
    %513 = vmatpush.xpose.msra.mxu0 0.0
    %514 = vmatpush.xpose.msra.mxu0 0.0
    %515 = vmatpush.xpose.msra.mxu0 0.0
    %516 = vmatpush.xpose.msra.mxu0 0.0
    %517 = vmatpush.xpose.msra.mxu0 0.0
    %518 = vmatpush.xpose.msra.mxu0 0.0
    %519 = vmatpush.xpose.msra.mxu0 0.0
    %520 = vmatpush.xpose.msra.mxu0 0.0
    %521 = vmatpush.xpose.msra.mxu0 0.0
    %522 = vmatpush.xpose.msra.mxu0 0.0
    %523 = vmatpush.xpose.msra.mxu0 %v506
    %524 = vmatmul.f32.gmra.mxu0 %v503
    %v525 = vpop.f32.mrf.mxu0
    %v526 = vadd.f32 0.0, %v525
    %527 = vdwg.mxu0
    %v529 = vsel %vm149, %v240, 0
    %v532 = vsel %vm149, %v344, 0
    %534 = vmatpush.xpose.msra.mxu0 0.0
    %535 = vmatpush.xpose.msra.mxu0 0.0
    %536 = vmatpush.xpose.msra.mxu0 0.0
    %537 = vmatpush.xpose.msra.mxu0 0.0
    %538 = vmatpush.xpose.msra.mxu0 0.0
    %539 = vmatpush.xpose.msra.mxu0 0.0
    %540 = vmatpush.xpose.msra.mxu0 0.0
    %541 = vmatpush.xpose.msra.mxu0 0.0
    %542 = vmatpush.xpose.msra.mxu0 0.0
    %543 = vmatpush.xpose.msra.mxu0 0.0
    %544 = vmatpush.xpose.msra.mxu0 0.0
    %545 = vmatpush.xpose.msra.mxu0 0.0
    %546 = vmatpush.xpose.msra.mxu0 0.0
    %547 = vmatpush.xpose.msra.mxu0 0.0
    %548 = vmatpush.xpose.msra.mxu0 0.0
    %549 = vmatpush.xpose.msra.mxu0 %v532
    %550 = vmatmul.f32.gmra.mxu0 %v529
    %v551 = vpop.f32.mrf.mxu0
    %v552 = vadd.f32 0.0, %v551
    %553 = vdwg.mxu0
    %vm554 = vcmask 64512
    %v555 = vsel %vm554, %v474, -inf
    %556 = vmax.xlane.f32.xlu0 %v555
    %v557 = vpop.xlane.xlu0 %556
    %v558 = vsel %vm554, %v500, -inf
    %559 = vmax.xlane.f32.xlu0 %v558
    %v560 = vpop.xlane.xlu0 %559
    %v561 = vsel %vm554, %v526, -inf
    %562 = vmax.xlane.f32.xlu0 %v561
    %v563 = vpop.xlane.xlu0 %562
    %v564 = vsel %vm554, %v552, -inf
    %565 = vmax.xlane.f32.xlu0 %v564
    %v566 = vpop.xlane.xlu0 %565
    %v567 = vsub.f32 %v474, %v557
    %v568 = vsub.f32 %v500, %v560
    %v569 = vsub.f32 %v526, %v563
    %v570 = vsub.f32 %v552, %v566
    %v571 = vmul.f32 %v567, 1.442695
    %v572 = vpow.pop %v571
    %v573 = vmul.f32 %v568, 1.442695
    %v574 = vpow.pop %v573
    %v575 = vmul.f32 %v569, 1.442695
    %v576 = vpow.pop %v575
    %v577 = vmul.f32 %v570, 1.442695
    %v578 = vpow.pop %v577
    %v579 = vsel %vm554, %v572, 0.0
    %580 = vadd.xlane.f32.xlu0 %v579
    %v581 = vpop.xlane.xlu0 %580
    %v582 = vsel %vm554, %v574, 0.0
    %583 = vadd.xlane.f32.xlu0 %v582
    %v584 = vpop.xlane.xlu0 %583
    %v585 = vsel %vm554, %v576, 0.0
    %586 = vadd.xlane.f32.xlu0 %v585
    %v587 = vpop.xlane.xlu0 %586
    %v588 = vsel %vm554, %v578, 0.0
    %589 = vadd.xlane.f32.xlu0 %v588
    %v590 = vpop.xlane.xlu0 %589
    %v591 = vrcp.pop %v581
    %v592 = vmul.f32 %v581, %v591
    %v593 = vsub.f32 1.0, %v592
    %v594 = vmul.f32 %v591, %v593
    %v595 = vadd.f32 %v591, %v594
    %vm596 = vweird.f32 %v581
    %vm597 = vweird.f32 %v591
    %vm598 = vmor %vm596, %vm597
    %v599 = vsel %vm598, %v591, %v595
    %v600 = vand.u32 2147483647, %v581
    %vm601 = vcmp.eq.f32.partialorder %v600, 8.507059e+37
    %v602 = vand.u32 %v581, 2147483648
    %v603 = vor.u32 1.1754944e-38, %v602
    %v604 = vsel %vm601, %v603, %v599
    %v605 = vmul.f32 %v572, %v604
    %v606 = vrcp.pop %v584
    %v607 = vmul.f32 %v584, %v606
    %v608 = vsub.f32 1.0, %v607
    %v609 = vmul.f32 %v606, %v608
    %v610 = vadd.f32 %v606, %v609
    %vm611 = vweird.f32 %v584
    %vm612 = vweird.f32 %v606
    %vm613 = vmor %vm611, %vm612
    %v614 = vsel %vm613, %v606, %v610
    %v615 = vand.u32 2147483647, %v584
    %vm616 = vcmp.eq.f32.partialorder %v615, 8.507059e+37
    %v617 = vand.u32 %v584, 2147483648
    %v618 = vor.u32 1.1754944e-38, %v617
    %v619 = vsel %vm616, %v618, %v614
    %v620 = vmul.f32 %v574, %v619
    %v621 = vrcp.pop %v587
    %v622 = vmul.f32 %v587, %v621
    %v623 = vsub.f32 1.0, %v622
    %v624 = vmul.f32 %v621, %v623
    %v625 = vadd.f32 %v621, %v624
    %vm626 = vweird.f32 %v587
    %vm627 = vweird.f32 %v621
    %vm628 = vmor %vm626, %vm627
    %v629 = vsel %vm628, %v621, %v625
    %v630 = vand.u32 2147483647, %v587
    %vm631 = vcmp.eq.f32.partialorder %v630, 8.507059e+37
    %v632 = vand.u32 %v587, 2147483648
    %v633 = vor.u32 1.1754944e-38, %v632
    %v634 = vsel %vm631, %v633, %v629
    %v635 = vmul.f32 %v576, %v634
    %v636 = vrcp.pop %v590
    %v637 = vmul.f32 %v590, %v636
    %v638 = vsub.f32 1.0, %v637
    %v639 = vmul.f32 %v636, %v638
    %v640 = vadd.f32 %v636, %v639
    %vm641 = vweird.f32 %v590
    %vm642 = vweird.f32 %v636
    %vm643 = vmor %vm641, %vm642
    %v644 = vsel %vm643, %v636, %v640
    %v645 = vand.u32 2147483647, %v590
    %vm646 = vcmp.eq.f32.partialorder %v645, 8.507059e+37
    %v647 = vand.u32 %v590, 2147483648
    %v648 = vor.u32 1.1754944e-38, %v647
    %v649 = vsel %vm646, %v648, %v644
    %v650 = vmul.f32 %v578, %v649
    %v652 = vsel %vm554, %v605, 0
    %654 = vmatpush.msra.mxu0 0.0
    %655 = vmatpush.msra.mxu0 0.0
    %656 = vmatpush.msra.mxu0 0.0
    %657 = vmatpush.msra.mxu0 0.0
    %658 = vmatpush.msra.mxu0 0.0
    %659 = vmatpush.msra.mxu0 0.0
    %660 = vmatpush.msra.mxu0 0.0
    %661 = vmatpush.msra.mxu0 0.0
    %662 = vmatpush.msra.mxu0 0.0
    %663 = vmatpush.msra.mxu0 0.0
    %664 = vmatpush.msra.mxu0 0.0
    %665 = vmatpush.msra.mxu0 0.0
    %666 = vmatpush.msra.mxu0 0.0
    %667 = vmatpush.msra.mxu0 0.0
    %668 = vmatpush.msra.mxu0 0.0
    %669 = vmatpush.msra.mxu0 %v388
    %670 = vmatmul.f32.gmra.mxu0 %v652
    %v671 = vpop.f32.mrf.mxu0
    %v672 = vadd.f32 0.0, %v671
    %673 = vdwg.mxu0
    %v675 = vsel %vm554, %v620, 0
    %677 = vmatpush.msra.mxu0 0.0
    %678 = vmatpush.msra.mxu0 0.0
    %679 = vmatpush.msra.mxu0 0.0
    %680 = vmatpush.msra.mxu0 0.0
    %681 = vmatpush.msra.mxu0 0.0
    %682 = vmatpush.msra.mxu0 0.0
    %683 = vmatpush.msra.mxu0 0.0
    %684 = vmatpush.msra.mxu0 0.0
    %685 = vmatpush.msra.mxu0 0.0
    %686 = vmatpush.msra.mxu0 0.0
    %687 = vmatpush.msra.mxu0 0.0
    %688 = vmatpush.msra.mxu0 0.0
    %689 = vmatpush.msra.mxu0 0.0
    %690 = vmatpush.msra.mxu0 0.0
    %691 = vmatpush.msra.mxu0 0.0
    %692 = vmatpush.msra.mxu0 %v408
    %693 = vmatmul.f32.gmra.mxu0 %v675
    %v694 = vpop.f32.mrf.mxu0
    %v695 = vadd.f32 0.0, %v694
    %696 = vdwg.mxu0
    %v698 = vsel %vm554, %v635, 0
    %700 = vmatpush.msra.mxu0 0.0
    %701 = vmatpush.msra.mxu0 0.0
    %702 = vmatpush.msra.mxu0 0.0
    %703 = vmatpush.msra.mxu0 0.0
    %704 = vmatpush.msra.mxu0 0.0
    %705 = vmatpush.msra.mxu0 0.0
    %706 = vmatpush.msra.mxu0 0.0
    %707 = vmatpush.msra.mxu0 0.0
    %708 = vmatpush.msra.mxu0 0.0
    %709 = vmatpush.msra.mxu0 0.0
    %710 = vmatpush.msra.mxu0 0.0
    %711 = vmatpush.msra.mxu0 0.0
    %712 = vmatpush.msra.mxu0 0.0
    %713 = vmatpush.msra.mxu0 0.0
    %714 = vmatpush.msra.mxu0 0.0
    %715 = vmatpush.msra.mxu0 %v428
    %716 = vmatmul.f32.gmra.mxu0 %v698
    %v717 = vpop.f32.mrf.mxu0
    %v718 = vadd.f32 0.0, %v717
    %719 = vdwg.mxu0
    %v721 = vsel %vm554, %v650, 0
    %723 = vmatpush.msra.mxu0 0.0
    %724 = vmatpush.msra.mxu0 0.0
    %725 = vmatpush.msra.mxu0 0.0
    %726 = vmatpush.msra.mxu0 0.0
    %727 = vmatpush.msra.mxu0 0.0
    %728 = vmatpush.msra.mxu0 0.0
    %729 = vmatpush.msra.mxu0 0.0
    %730 = vmatpush.msra.mxu0 0.0
    %731 = vmatpush.msra.mxu0 0.0
    %732 = vmatpush.msra.mxu0 0.0
    %733 = vmatpush.msra.mxu0 0.0
    %734 = vmatpush.msra.mxu0 0.0
    %735 = vmatpush.msra.mxu0 0.0
    %736 = vmatpush.msra.mxu0 0.0
    %737 = vmatpush.msra.mxu0 0.0
    %738 = vmatpush.msra.mxu0 %v448
    %739 = vmatmul.f32.gmra.mxu0 %v721
    %v740 = vpop.f32.mrf.mxu0
    %v741 = vadd.f32 0.0, %v740
    %742 = vdwg.mxu0
    %743 = vst.msk [vmem:[#allocation13] sm:$0xff] %vm149, %v672
    %744 = vst.msk [vmem:[#allocation13 + $0x8] sm:$0xff] %vm149, %v695
    %745 = vst.msk [vmem:[#allocation13 + $0x10] sm:$0xff] %vm149, %v718
    %746 = vst.msk [vmem:[#allocation13 + $0x18] sm:$0xff] %vm149, %v741
    // Predicated region
    $region54: #{tpu_custom_call.1} parent=1 // pred_check
      _
    $region55: #{tpu_custom_call.1} parent=1 // pred_check_branch
      %748 = sbr.rel (0) target = $region57
    $region56: #{tpu_custom_call.1} parent=1 // pred_region
      %750 = vsyncadd [#allocation4], 0
      %s751 = sshll.u32 [#allocation13], 4
      %s752 = int_to_ptr.vmem [resolvable:$true] %s751
      %s753 = sshll.u32 %s7, 4
      %s754 = int_to_ptr.hbm [resolvable:$true] %s753
      %759 = dma.vmem_to_hbm [thread:$0]  %s752, 512, %s754, [#allocation4], 128, 128, 8
    $region57: #{tpu_custom_call.1} parent=1 // pred_fallthru
      _
    // Predicated region
    $region58: #{tpu_custom_call.1} parent=1 // pred_check
      _
    $region59: #{tpu_custom_call.1} parent=1 // pred_check_branch
      %761 = sbr.rel (0) target = $region61
    $region60: #{tpu_custom_call.1} parent=1 // pred_region
      %763 = dma.done [#allocation4], 512
    $region61: #{tpu_custom_call.1} parent=1 // pred_fallthru
      _
    %764 = vsyncpa [#allocation3], 1
    %765 = vsyncpa [#allocation6], 1
    %766 = vsyncpa [#allocation9], 1
    %767 = vsyncpa [#allocation12], 1
    %768 = vsyncpa [#allocation4], 1

</llo_original>
